<compile_context>
chip_gen: v7x
topology: tpu7x:2x2x1
jax: 0.10.0
libtpu: 0.0.40
codegen_flags: <defaults>
</compile_context>

<pallas_src>
import functools

import numpy as np
import jax
import jax.numpy as jnp
from jax.experimental import pallas as pl
from jax.experimental.pallas import tpu as pltpu


def _conv3x3_kernel(x_ref, w_ref, m_ref, o_ref, patches_ref, *, block_b, C, W, HW):
    """3x3 / pad-1 / no-bias conv on a (block_b, C, HW) block.

    x_ref:       (block_b, C, HW)   input images, lane-flattened spatial
    w_ref:       (C_out, 9*C)       weights, columns ordered (kh, kw, cin), bf16
    m_ref:       (9, HW)            per-tap in-bounds masks (f32, 0/1)
    o_ref:       (block_b, C_out, HW) conv output (f32)
    patches_ref: (9*C, HW)          bf16 im2col scratch (reused per image)
    """
    w = w_ref[...]                                   # (C_out, 9C) bf16
    mvals = m_ref[...]                               # (9, HW) f32
    # Boundary masks hoisted out of the per-image loop (f32 compare -> bool).
    valid = [mvals[t:t + 1, :] != 0.0 for t in range(9)]

    for b in range(block_b):                         # static unroll (block_b small)
        xb = x_ref[b]                                # (C, HW), input dtype
        t = 0
        for dh in (-1, 0, 1):
            for dw in (-1, 0, 1):
                d = dh * W + dw
                if d == 0:
                    tap = xb
                else:
                    # shifted[q] = xb[:, (q + d) mod HW]; wrap-around sources are
                    # exactly the out-of-image pixels and get masked to zero.
                    shifted = pltpu.roll(xb, shift=(-d) % HW, axis=1)
                    tap = jnp.where(valid[t], shifted, 0.0)
                # im2col: write the tap straight into the scratch (no concatenate),
                # narrowing to bf16 only at the matmul operand.
                patches_ref[t * C:(t + 1) * C, :] = tap.astype(patches_ref.dtype)
                t += 1
        o_ref[b] = jnp.dot(w, patches_ref[...],
                           preferred_element_type=jnp.float32).astype(o_ref.dtype)


def upsample_pallas(x, weight, block_b=None):
    """Conv2d(C -> 2C, k=3, s=1, p=1, bias=False) + PixelShuffle(2)."""
    B, C, H, W = x.shape
    C_out = weight.shape[0]
    HW = H * W
    compute_dtype = jnp.bfloat16

    # Lane-dense views: free reshapes, no XLA transpose passes on x.
    x3 = x.reshape(B, C, HW)
    # Weight as (C_out, 9*C), columns ordered (kh, kw, cin); bf16 for a single
    # MXU pass (accumulation stays f32 in the kernel).
    w_mat = jnp.transpose(weight, (0, 2, 3, 1)).reshape(C_out, 9 * C)
    w_mat = w_mat.astype(compute_dtype)

    # Per-tap image-boundary masks, built host-side (no in-kernel div/mod).
    row = np.arange(H, dtype=np.int64).reshape(H, 1)
    col = np.arange(W, dtype=np.int64).reshape(1, W)
    mask_rows = []
    for dh in (-1, 0, 1):
        for dw in (-1, 0, 1):
            ok = ((row + dh >= 0) & (row + dh < H) &
                  (col + dw >= 0) & (col + dw < W))
            mask_rows.append(ok.reshape(-1))
    masks = jnp.asarray(np.stack(mask_rows).astype(np.float32))      # (9, HW)

    # ---- generation-aware tiling / VMEM budgeting --------------------------
    try:
        vmem_cap = int(pltpu.get_tpu_info().vmem_capacity_bytes)
    except Exception:
        vmem_cap = 64 << 20               # conservative: v7x per-TensorCore VMEM
    budget = min(vmem_cap // 2, 40 << 20)  # per-step working set cap

    x_bytes = x.dtype.itemsize
    per_image = 2 * C * HW * x_bytes + 2 * C_out * HW * 4   # 2x-buffered in/out
    fixed = (9 * C * HW * 2                                  # im2col scratch (bf16)
             + 2 * C_out * 9 * C * 2                         # weight block (2x buf)
             + 2 * 16 * HW * 4                               # mask block (padded)
             + (2 << 20))                                    # compiler slack
    if block_b is None:
        block_b = max(1, (budget - fixed) // per_image) if budget > fixed else 1
        block_b = int(min(block_b, B, 8))   # cap the in-kernel unroll
        if B >= 2:
            block_b = min(block_b, B // 2)  # >= 2 grid steps (v7x dual TC)
        block_b = max(1, block_b)
        while B % block_b:
            block_b -= 1
    # TODO(synk): a single image whose C*HW / 9C*HW slabs exceed VMEM would need
    # spatial row-block tiling with a 1-row halo; not implemented here.

    footprint = fixed + per_image * block_b
    vmem_limit = int(min(vmem_cap - (4 << 20),
                         max(footprint + (8 << 20), 32 << 20)))

    conv = pl.pallas_call(
        functools.partial(_conv3x3_kernel, block_b=block_b, C=C, W=W, HW=HW),
        out_shape=jax.ShapeDtypeStruct((B, C_out, HW), jnp.float32),
        grid_spec=pltpu.PrefetchScalarGridSpec(
            num_scalar_prefetch=0,
            grid=(B // block_b,),
            in_specs=[
                pl.BlockSpec((block_b, C, HW), lambda i: (i, 0, 0)),
                pl.BlockSpec((C_out, 9 * C), lambda i: (0, 0)),
                pl.BlockSpec((9, HW), lambda i: (0, 0)),
            ],
            out_specs=pl.BlockSpec((block_b, C_out, HW), lambda i: (i, 0, 0)),
            scratch_shapes=[pltpu.VMEM((9 * C, HW), compute_dtype)],
        ),
        compiler_params=pltpu.CompilerParams(
            dimension_semantics=("parallel",),
            vmem_limit_bytes=vmem_limit),
    )(x3, w_mat, masks)

    # PixelShuffle(2): the only remaining XLA permutation pass on the output.
    # TODO(synk): could be fused in-kernel (2x2 lane/row interleave before the
    # store) to save one more HBM round-trip of the output tensor.
    r = 2
    y = conv.reshape(B, C_out // (r * r), r, r, H, W)
    y = y.transpose(0, 1, 4, 2, 5, 3)
    return y.reshape(B, C_out // (r * r), H * r, W * r)


def upsample_ref(x, weight):
    """Pure-JAX reference: Conv2d(3x3, pad=1, no bias) + PixelShuffle(2).

    Exact f32 elementwise multiply-accumulate (no matmul precision ambiguity).
    """
    B, C, H, W = x.shape
    C_out = weight.shape[0]
    xp = jnp.pad(x.astype(jnp.float32), ((0, 0), (0, 0), (1, 1), (1, 1)))
    y = jnp.zeros((B, C_out, H, W), jnp.float32)
    for kh in range(3):
        for kw in range(3):
            w_k = weight[:, :, kh, kw].astype(jnp.float32)      # (C_out, C)
            xs = xp[:, :, kh:kh + H, kw:kw + W]                 # (B, C, H, W)
            y = y + jnp.sum(w_k[None, :, :, None, None] * xs[:, None], axis=2)
    r = 2
    y = y.reshape(B, C_out // (r * r), r, r, H, W)
    y = y.transpose(0, 1, 4, 2, 5, 3)
    return y.reshape(B, C_out // (r * r), H * r, W * r)


if __name__ == "__main__":
    B, n_feat, H, W = 2, 8, 16, 16
    key = jax.random.PRNGKey(0)
    kx, kw = jax.random.split(key)
    # Round test data through bf16 so the kernel's bf16 matmul operands are exact
    # and the comparison only sees f32 accumulation-order noise.
    x = jax.random.normal(kx, (B, n_feat, H, W), jnp.float32)
    x = x.astype(jnp.bfloat16).astype(jnp.float32)
    weight = 0.1 * jax.random.normal(kw, (2 * n_feat, n_feat, 3, 3), jnp.float32)
    weight = weight.astype(jnp.bfloat16).astype(jnp.float32)

    out = upsample_pallas(x, weight)
    out = jax.block_until_ready(out)

    ref = upsample_ref(x, weight)
    assert out.shape == (B, n_feat // 2, 2 * H, 2 * W), out.shape
    max_err = float(jnp.max(jnp.abs(out - ref)))
    assert max_err < 1e-3, f"max abs err {max_err}"
    print("KERNEL_OK")
</pallas_src>

<mosaic_0001>
module attributes {stable_mosaic.version = 11 : i64} {
  func.func @_conv3x3_kernel(%arg0: i32, %arg1: memref<1x8x256xf32, #tpu.memory_space<vmem>>, %arg2: memref<16x72xbf16, #tpu.memory_space<vmem>>, %arg3: memref<9x256xf32, #tpu.memory_space<vmem>>, %arg4: memref<1x16x256xf32, #tpu.memory_space<vmem>>, %arg5: memref<72x256xbf16, #tpu.memory_space<vmem>>) attributes {dimension_semantics = [#tpu.dimension_semantics<parallel>], iteration_bounds = array<i64: 2>, scalar_prefetch = 0 : i64, scratch_operands = 1 : i64, tpu.core_type = #tpu.core_type<tc>, window_params = [{transform_indices = @transform_0, window_bounds = array<i64: 1, 8, 256>}, {pipeline_mode = #tpu.pipeline_mode<synchronous>, transform_indices = @transform_1, window_bounds = array<i64: 16, 72>}, {pipeline_mode = #tpu.pipeline_mode<synchronous>, transform_indices = @transform_2, window_bounds = array<i64: 9, 256>}, {transform_indices = @transform_3, window_bounds = array<i64: 1, 16, 256>}]} {
    %c0 = arith.constant 0 : index
    %c0_0 = arith.constant 0 : index
    %0 = vector.load %arg2[%c0, %c0_0] : memref<16x72xbf16, #tpu.memory_space<vmem>>, vector<16x72xbf16>
    %c0_1 = arith.constant 0 : index
    %c0_2 = arith.constant 0 : index
    %1 = vector.load %arg3[%c0_1, %c0_2] : memref<9x256xf32, #tpu.memory_space<vmem>>, vector<9x256xf32>
    %2 = vector.extract_strided_slice %1 {offsets = [0, 0], sizes = [1, 256], strides = [1, 1]} : vector<9x256xf32> to vector<1x256xf32>
    %cst = arith.constant 0.000000e+00 : f32
    %3 = vector.broadcast %cst : f32 to vector<1x256xf32>
    %4 = arith.cmpf one, %2, %3 : vector<1x256xf32>
    %5 = vector.extract_strided_slice %1 {offsets = [1, 0], sizes = [1, 256], strides = [1, 1]} : vector<9x256xf32> to vector<1x256xf32>
    %cst_3 = arith.constant 0.000000e+00 : f32
    %6 = vector.broadcast %cst_3 : f32 to vector<1x256xf32>
    %7 = arith.cmpf one, %5, %6 : vector<1x256xf32>
    %8 = vector.extract_strided_slice %1 {offsets = [2, 0], sizes = [1, 256], strides = [1, 1]} : vector<9x256xf32> to vector<1x256xf32>
    %cst_4 = arith.constant 0.000000e+00 : f32
    %9 = vector.broadcast %cst_4 : f32 to vector<1x256xf32>
    %10 = arith.cmpf one, %8, %9 : vector<1x256xf32>
    %11 = vector.extract_strided_slice %1 {offsets = [3, 0], sizes = [1, 256], strides = [1, 1]} : vector<9x256xf32> to vector<1x256xf32>
    %cst_5 = arith.constant 0.000000e+00 : f32
    %12 = vector.broadcast %cst_5 : f32 to vector<1x256xf32>
    %13 = arith.cmpf one, %11, %12 : vector<1x256xf32>
    %14 = vector.extract_strided_slice %1 {offsets = [5, 0], sizes = [1, 256], strides = [1, 1]} : vector<9x256xf32> to vector<1x256xf32>
    %cst_6 = arith.constant 0.000000e+00 : f32
    %15 = vector.broadcast %cst_6 : f32 to vector<1x256xf32>
    %16 = arith.cmpf one, %14, %15 : vector<1x256xf32>
    %17 = vector.extract_strided_slice %1 {offsets = [6, 0], sizes = [1, 256], strides = [1, 1]} : vector<9x256xf32> to vector<1x256xf32>
    %cst_7 = arith.constant 0.000000e+00 : f32
    %18 = vector.broadcast %cst_7 : f32 to vector<1x256xf32>
    %19 = arith.cmpf one, %17, %18 : vector<1x256xf32>
    %20 = vector.extract_strided_slice %1 {offsets = [7, 0], sizes = [1, 256], strides = [1, 1]} : vector<9x256xf32> to vector<1x256xf32>
    %cst_8 = arith.constant 0.000000e+00 : f32
    %21 = vector.broadcast %cst_8 : f32 to vector<1x256xf32>
    %22 = arith.cmpf one, %20, %21 : vector<1x256xf32>
    %23 = vector.extract_strided_slice %1 {offsets = [8, 0], sizes = [1, 256], strides = [1, 1]} : vector<9x256xf32> to vector<1x256xf32>
    %cst_9 = arith.constant 0.000000e+00 : f32
    %24 = vector.broadcast %cst_9 : f32 to vector<1x256xf32>
    %25 = arith.cmpf one, %23, %24 : vector<1x256xf32>
    %c0_10 = arith.constant 0 : index
    %c0_11 = arith.constant 0 : index
    %c0_12 = arith.constant 0 : index
    %26 = vector.load %arg1[%c0_10, %c0_11, %c0_12] : memref<1x8x256xf32, #tpu.memory_space<vmem>>, vector<1x8x256xf32>
    %27 = vector.shape_cast %26 : vector<1x8x256xf32> to vector<8x256xf32>
    %c17_i32 = arith.constant 17 : i32
    %28 = tpu.dynamic_rotate %27 by %c17_i32 dim 1 : vector<8x256xf32>, i32 -> vector<8x256xf32>
    %cst_13 = arith.constant 0.000000e+00 : f32
    %29 = vector.shape_cast %4 : vector<1x256xi1> to vector<1x256xi1>
    %30 = vector.broadcast %29 : vector<1x256xi1> to vector<8x256xi1>
    %31 = vector.broadcast %cst_13 : f32 to vector<8x256xf32>
    %32 = arith.select %30, %28, %31 : vector<8x256xi1>, vector<8x256xf32>
    %33 = arith.truncf %32 : vector<8x256xf32> to vector<8x256xbf16>
    %c0_14 = arith.constant 0 : index
    %c0_15 = arith.constant 0 : index
    %34 = vector.load %arg5[%c0_14, %c0_15] : memref<72x256xbf16, #tpu.memory_space<vmem>>, vector<8x256xbf16>
    tpu.vector_store %arg5[%c0_14, %c0_15], %33 {strides = array<i32>} : memref<72x256xbf16, #tpu.memory_space<vmem>>, vector<8x256xbf16>,
    %c16_i32 = arith.constant 16 : i32
    %35 = tpu.dynamic_rotate %27 by %c16_i32 dim 1 : vector<8x256xf32>, i32 -> vector<8x256xf32>
    %cst_16 = arith.constant 0.000000e+00 : f32
    %36 = vector.shape_cast %7 : vector<1x256xi1> to vector<1x256xi1>
    %37 = vector.broadcast %36 : vector<1x256xi1> to vector<8x256xi1>
    %38 = vector.broadcast %cst_16 : f32 to vector<8x256xf32>
    %39 = arith.select %37, %35, %38 : vector<8x256xi1>, vector<8x256xf32>
    %40 = arith.truncf %39 : vector<8x256xf32> to vector<8x256xbf16>
    %c8 = arith.constant 8 : index
    %c0_17 = arith.constant 0 : index
    %41 = vector.load %arg5[%c8, %c0_17] : memref<72x256xbf16, #tpu.memory_space<vmem>>, vector<8x256xbf16>
    tpu.vector_store %arg5[%c8, %c0_17], %40 {strides = array<i32>} : memref<72x256xbf16, #tpu.memory_space<vmem>>, vector<8x256xbf16>,
    %c15_i32 = arith.constant 15 : i32
    %42 = tpu.dynamic_rotate %27 by %c15_i32 dim 1 : vector<8x256xf32>, i32 -> vector<8x256xf32>
    %cst_18 = arith.constant 0.000000e+00 : f32
    %43 = vector.shape_cast %10 : vector<1x256xi1> to vector<1x256xi1>
    %44 = vector.broadcast %43 : vector<1x256xi1> to vector<8x256xi1>
    %45 = vector.broadcast %cst_18 : f32 to vector<8x256xf32>
    %46 = arith.select %44, %42, %45 : vector<8x256xi1>, vector<8x256xf32>
    %47 = arith.truncf %46 : vector<8x256xf32> to vector<8x256xbf16>
    %c16 = arith.constant 16 : index
    %c0_19 = arith.constant 0 : index
    %48 = vector.load %arg5[%c16, %c0_19] : memref<72x256xbf16, #tpu.memory_space<vmem>>, vector<8x256xbf16>
    tpu.vector_store %arg5[%c16, %c0_19], %47 {strides = array<i32>} : memref<72x256xbf16, #tpu.memory_space<vmem>>, vector<8x256xbf16>,
    %c1_i32 = arith.constant 1 : i32
    %49 = tpu.dynamic_rotate %27 by %c1_i32 dim 1 : vector<8x256xf32>, i32 -> vector<8x256xf32>
    %cst_20 = arith.constant 0.000000e+00 : f32
    %50 = vector.shape_cast %13 : vector<1x256xi1> to vector<1x256xi1>
    %51 = vector.broadcast %50 : vector<1x256xi1> to vector<8x256xi1>
    %52 = vector.broadcast %cst_20 : f32 to vector<8x256xf32>
    %53 = arith.select %51, %49, %52 : vector<8x256xi1>, vector<8x256xf32>
    %54 = arith.truncf %53 : vector<8x256xf32> to vector<8x256xbf16>
    %c24 = arith.constant 24 : index
    %c0_21 = arith.constant 0 : index
    %55 = vector.load %arg5[%c24, %c0_21] : memref<72x256xbf16, #tpu.memory_space<vmem>>, vector<8x256xbf16>
    tpu.vector_store %arg5[%c24, %c0_21], %54 {strides = array<i32>} : memref<72x256xbf16, #tpu.memory_space<vmem>>, vector<8x256xbf16>,
    %56 = arith.truncf %27 : vector<8x256xf32> to vector<8x256xbf16>
    %c32 = arith.constant 32 : index
    %c0_22 = arith.constant 0 : index
    %57 = vector.load %arg5[%c32, %c0_22] : memref<72x256xbf16, #tpu.memory_space<vmem>>, vector<8x256xbf16>
    tpu.vector_store %arg5[%c32, %c0_22], %56 {strides = array<i32>} : memref<72x256xbf16, #tpu.memory_space<vmem>>, vector<8x256xbf16>,
    %c255_i32 = arith.constant 255 : i32
    %58 = tpu.dynamic_rotate %27 by %c255_i32 dim 1 : vector<8x256xf32>, i32 -> vector<8x256xf32>
    %cst_23 = arith.constant 0.000000e+00 : f32
    %59 = vector.shape_cast %16 : vector<1x256xi1> to vector<1x256xi1>
    %60 = vector.broadcast %59 : vector<1x256xi1> to vector<8x256xi1>
    %61 = vector.broadcast %cst_23 : f32 to vector<8x256xf32>
    %62 = arith.select %60, %58, %61 : vector<8x256xi1>, vector<8x256xf32>
    %63 = arith.truncf %62 : vector<8x256xf32> to vector<8x256xbf16>
    %c40 = arith.constant 40 : index
    %c0_24 = arith.constant 0 : index
    %64 = vector.load %arg5[%c40, %c0_24] : memref<72x256xbf16, #tpu.memory_space<vmem>>, vector<8x256xbf16>
    tpu.vector_store %arg5[%c40, %c0_24], %63 {strides = array<i32>} : memref<72x256xbf16, #tpu.memory_space<vmem>>, vector<8x256xbf16>,
    %c241_i32 = arith.constant 241 : i32
    %65 = tpu.dynamic_rotate %27 by %c241_i32 dim 1 : vector<8x256xf32>, i32 -> vector<8x256xf32>
    %cst_25 = arith.constant 0.000000e+00 : f32
    %66 = vector.shape_cast %19 : vector<1x256xi1> to vector<1x256xi1>
    %67 = vector.broadcast %66 : vector<1x256xi1> to vector<8x256xi1>
    %68 = vector.broadcast %cst_25 : f32 to vector<8x256xf32>
    %69 = arith.select %67, %65, %68 : vector<8x256xi1>, vector<8x256xf32>
    %70 = arith.truncf %69 : vector<8x256xf32> to vector<8x256xbf16>
    %c48 = arith.constant 48 : index
    %c0_26 = arith.constant 0 : index
    %71 = vector.load %arg5[%c48, %c0_26] : memref<72x256xbf16, #tpu.memory_space<vmem>>, vector<8x256xbf16>
    tpu.vector_store %arg5[%c48, %c0_26], %70 {strides = array<i32>} : memref<72x256xbf16, #tpu.memory_space<vmem>>, vector<8x256xbf16>,
    %c240_i32 = arith.constant 240 : i32
    %72 = tpu.dynamic_rotate %27 by %c240_i32 dim 1 : vector<8x256xf32>, i32 -> vector<8x256xf32>
    %cst_27 = arith.constant 0.000000e+00 : f32
    %73 = vector.shape_cast %22 : vector<1x256xi1> to vector<1x256xi1>
    %74 = vector.broadcast %73 : vector<1x256xi1> to vector<8x256xi1>
    %75 = vector.broadcast %cst_27 : f32 to vector<8x256xf32>
    %76 = arith.select %74, %72, %75 : vector<8x256xi1>, vector<8x256xf32>
    %77 = arith.truncf %76 : vector<8x256xf32> to vector<8x256xbf16>
    %c56 = arith.constant 56 : index
    %c0_28 = arith.constant 0 : index
    %78 = vector.load %arg5[%c56, %c0_28] : memref<72x256xbf16, #tpu.memory_space<vmem>>, vector<8x256xbf16>
    tpu.vector_store %arg5[%c56, %c0_28], %77 {strides = array<i32>} : memref<72x256xbf16, #tpu.memory_space<vmem>>, vector<8x256xbf16>,
    %c239_i32 = arith.constant 239 : i32
    %79 = tpu.dynamic_rotate %27 by %c239_i32 dim 1 : vector<8x256xf32>, i32 -> vector<8x256xf32>
    %cst_29 = arith.constant 0.000000e+00 : f32
    %80 = vector.shape_cast %25 : vector<1x256xi1> to vector<1x256xi1>
    %81 = vector.broadcast %80 : vector<1x256xi1> to vector<8x256xi1>
    %82 = vector.broadcast %cst_29 : f32 to vector<8x256xf32>
    %83 = arith.select %81, %79, %82 : vector<8x256xi1>, vector<8x256xf32>
    %84 = arith.truncf %83 : vector<8x256xf32> to vector<8x256xbf16>
    %c64 = arith.constant 64 : index
    %c0_30 = arith.constant 0 : index
    %85 = vector.load %arg5[%c64, %c0_30] : memref<72x256xbf16, #tpu.memory_space<vmem>>, vector<8x256xbf16>
    tpu.vector_store %arg5[%c64, %c0_30], %84 {strides = array<i32>} : memref<72x256xbf16, #tpu.memory_space<vmem>>, vector<8x256xbf16>,
    %c0_31 = arith.constant 0 : index
    %c0_32 = arith.constant 0 : index
    %86 = vector.load %arg5[%c0_31, %c0_32] : memref<72x256xbf16, #tpu.memory_space<vmem>>, vector<72x256xbf16>
    %cst_33 = arith.constant dense<0.000000e+00> : vector<16x256xf32>
    %87 = tpu.matmul %0, %86, %cst_33 {dimension_numbers = #tpu.dot_dimension_numbers<[1], [0], [0], [1], [0, 0, 1, 1], [], []>} : vector<16x72xbf16>, vector<72x256xbf16>, vector<16x256xf32> -> vector<16x256xf32>
    %c0_34 = arith.constant 0 : index
    %c0_35 = arith.constant 0 : index
    %c0_36 = arith.constant 0 : index
    %88 = vector.load %arg4[%c0_34, %c0_35, %c0_36] : memref<1x16x256xf32, #tpu.memory_space<vmem>>, vector<1x16x256xf32>
    %89 = vector.shape_cast %88 : vector<1x16x256xf32> to vector<16x256xf32>
    %90 = vector.shape_cast %87 : vector<16x256xf32> to vector<1x16x256xf32>
    tpu.vector_store %arg4[%c0_34, %c0_35, %c0_36], %90 {strides = array<i32>} : memref<1x16x256xf32, #tpu.memory_space<vmem>>, vector<1x16x256xf32>,
    return
  }
  func.func @transform_0(%arg0: i32) -> (i32, i32, i32) {
    %c0_i32 = arith.constant 0 : i32
    %c0_i32_0 = arith.constant 0 : i32
    %c0_i32_1 = arith.constant 0 : i32
    return %arg0, %c0_i32, %c0_i32_0 : i32, i32, i32
  }
  func.func @transform_1(%arg0: i32) -> (i32, i32) {
    %c0_i32 = arith.constant 0 : i32
    %c0_i32_0 = arith.constant 0 : i32
    %c0_i32_1 = arith.constant 0 : i32
    return %c0_i32, %c0_i32_0 : i32, i32
  }
  func.func @transform_2(%arg0: i32) -> (i32, i32) {
    %c0_i32 = arith.constant 0 : i32
    %c0_i32_0 = arith.constant 0 : i32
    %c0_i32_1 = arith.constant 0 : i32
    return %c0_i32, %c0_i32_0 : i32, i32
  }
  func.func @transform_3(%arg0: i32) -> (i32, i32, i32) {
    %c0_i32 = arith.constant 0 : i32
    %c0_i32_0 = arith.constant 0 : i32
    %c0_i32_1 = arith.constant 0 : i32
    return %arg0, %c0_i32, %c0_i32_0 : i32, i32, i32
  }
}

</mosaic_0001>

<llo_original>
// kernel: tpu_custom_call.1
$region0: #{tpu_custom_call.1}
  #allocation0 [shape = 'u32[]', space=smem, size = 0x4, offset = 0x4, fixed_abs, tag = 'smem constant byte address 0x4 - core index']
  #allocation1 [shape = 'u32[144,128]{1,0:T(1,128)}', space=vmem, size = 0x12000, scoped, tag = 'internal scratch']
  #allocation2 [shape = 'bf16[72,256]{1,0:T(8,128)(2,1)}', space=vmem, size = 0x9000, scoped, tag = 'scratch operand']
  %s0 = inlined_call_operand.hbm [shape: f32[2,8,256], index: 0, kind: input, shape index: {}]
  %s1 = inlined_call_operand.hbm [shape: bf16[16,72], index: 1, kind: input, shape index: {}]
  %s2 = inlined_call_operand.hbm [shape: f32[9,256], index: 2, kind: input, shape index: {}]
  %s3 = inlined_call_operand.hbm [shape: f32[2,16,256], index: 3, kind: output, shape index: {}]
  %s4 = sld [smem:[#allocation0]]
  $region57: #{tpu_custom_call.1} parent=0
    _
  %s6 = ssub.s32 1, %s4
  %s7 = scalar_select 0, %s6, %s4
  $region1: #{tpu_custom_call.1} parent=0
    #allocation3 [shape = 'u8[16384]{0}', space=vmem, size = 0x4000, scoped, tag = 'input window, operand 0']
    #allocation4 [shape = 's32[2]{0}', space=sflag, size = 0x8, scoped, tag = 'scoped memory for tpu_custom_call.1']
    #allocation5 [shape = 's32[2]{0}', space=sflag, size = 0x8, scoped, tag = 'scoped memory for tpu_custom_call.1']
    #allocation6 [shape = 'u8[4096]{0}', space=vmem, size = 0x1000, scoped, tag = 'input window, operand 1, single buffered']
    #allocation7 [shape = 's32[1]{0}', space=sflag, size = 0x4, scoped, tag = 'scoped memory for tpu_custom_call.1']
    #allocation8 [shape = 'u8[16384]{0}', space=vmem, size = 0x4000, scoped, tag = 'input window, operand 2, single buffered']
    #allocation9 [shape = 'u8[32768]{0}', space=vmem, size = 0x8000, scoped, tag = 'output window, operand 0']
    %8 = vsyncpa [#allocation4], 0
    %s9 = scalar_lea.sflag [#allocation4], 1
    %10 = vsyncpa %s9, 0
    %11 = vsyncpa [#allocation7], 0
    %12 = vsyncpa [#allocation5], 0
    %s13 = scalar_lea.sflag [#allocation5], 1
    %14 = vsyncpa %s13, 0
    loop: start=0, step=1, limit=4
    $region2: #{tpu_custom_call.1} parent=1 // loop_pre_header
      _
    $region3: #{tpu_custom_call.1} parent=1 // loop_header
      %s16 = sphi 0, %s20
      %p17 = scmp.ge.s32.totalorder %s16, 4
      %s26 = sphi 0, %s28
      %s29 = sphi 0, %s26
      %s30 = sphi 0, %s29
      %s46 = sphi 0, %s30
      %s50 = sphi 0, %s50
      %s52 = sphi 0, %s50
      %s53 = sphi 0, %s52
      %s67 = sphi 0, %s53
      %s71 = sphi 0, %s71
      %s73 = sphi 0, %s71
      %s74 = sphi 0, %s73
      %s88 = sphi 0, %s74
      %s94 = sphi 0, %s96
      %s97 = sphi 0, %s94
      %s98 = sphi 0, %s97
      %s114 = sphi 0, %s98
    $region4: #{tpu_custom_call.1} parent=1 // loop_header_branch
      %19 = sbr.rel (%p17) target = $region8
    $region5: #{tpu_custom_call.1} parent=1 // loop_body
      %s21 = ssub.s32 %s16, 1
      %s22 = ssub.s32 %s16, 2
      %s23 = sadd.s32 %s16, 1
      %s24 = ssub.s32 %s16, %s23
      %p25 = scmp.eq.s32.totalorder %s24, 0
      %s27 = sadd.s32 %s26, 1
      %s28 = scalar_select %p25, %s26, %s27
      %p31 = pneg %p25
      %p32 = scmp.eq.s32.totalorder %s16, 1
      %p33 = por %p31, %p32
      %p34 = scmp.ne.s32.totalorder %s26, %s29
      %p35 = scmp.eq.s32.totalorder %s16, 0
      %p36 = por %p34, %p35
      %p37 = scmp.ne.s32.totalorder %s26, %s29
      %p38 = scmp.eq.s32.totalorder %s21, 1
      %p39 = por %p37, %p38
      %p40 = scmp.ne.s32.totalorder %s29, %s30
      %p41 = scmp.eq.s32.totalorder %s21, 0
      %p42 = por %p40, %p41
      %p43 = scmp.ne.s32.totalorder %s29, %s30
      %p44 = scmp.eq.s32.totalorder %s22, 1
      %p45 = por %p43, %p44
      %p47 = scmp.ne.s32.totalorder %s30, %s46
      %p48 = scmp.eq.s32.totalorder %s22, 0
      %p49 = por %p47, %p48
      %s51 = sadd.s32 %s50, 1
      %p54 = scmp.eq.s32.totalorder %s16, 1
      %p55 = scmp.ne.s32.totalorder %s50, %s52
      %p56 = scmp.eq.s32.totalorder %s16, 0
      %p57 = por %p55, %p56
      %p58 = scmp.ne.s32.totalorder %s50, %s52
      %p59 = scmp.eq.s32.totalorder %s21, 1
      %p60 = por %p58, %p59
      %p61 = scmp.ne.s32.totalorder %s52, %s53
      %p62 = scmp.eq.s32.totalorder %s21, 0
      %p63 = por %p61, %p62
      %p64 = scmp.ne.s32.totalorder %s52, %s53
      %p65 = scmp.eq.s32.totalorder %s22, 1
      %p66 = por %p64, %p65
      %p68 = scmp.ne.s32.totalorder %s53, %s67
      %p69 = scmp.eq.s32.totalorder %s22, 0
      %p70 = por %p68, %p69
      %s72 = sadd.s32 %s71, 1
      %p75 = scmp.eq.s32.totalorder %s16, 1
      %p76 = scmp.ne.s32.totalorder %s71, %s73
      %p77 = scmp.eq.s32.totalorder %s16, 0
      %p78 = por %p76, %p77
      %p79 = scmp.ne.s32.totalorder %s71, %s73
      %p80 = scmp.eq.s32.totalorder %s21, 1
      %p81 = por %p79, %p80
      %p82 = scmp.ne.s32.totalorder %s73, %s74
      %p83 = scmp.eq.s32.totalorder %s21, 0
      %p84 = por %p82, %p83
      %p85 = scmp.ne.s32.totalorder %s73, %s74
      %p86 = scmp.eq.s32.totalorder %s22, 1
      %p87 = por %p85, %p86
      %p89 = scmp.ne.s32.totalorder %s74, %s88
      %p90 = scmp.eq.s32.totalorder %s22, 0
      %p91 = por %p89, %p90
      %s92 = ssub.s32 %s16, %s23
      %p93 = scmp.eq.s32.totalorder %s92, 0
      %s95 = sadd.s32 %s94, 1
      %s96 = scalar_select %p93, %s94, %s95
      %p99 = pneg %p93
      %p100 = scmp.eq.s32.totalorder %s16, 1
      %p101 = por %p99, %p100
      %p102 = scmp.ne.s32.totalorder %s94, %s97
      %p103 = scmp.eq.s32.totalorder %s16, 0
      %p104 = por %p102, %p103
      %p105 = scmp.ne.s32.totalorder %s94, %s97
      %p106 = scmp.eq.s32.totalorder %s21, 1
      %p107 = por %p105, %p106
      %p108 = scmp.ne.s32.totalorder %s97, %s98
      %p109 = scmp.eq.s32.totalorder %s21, 0
      %p110 = por %p108, %p109
      %p111 = scmp.ne.s32.totalorder %s97, %s98
      %p112 = scmp.eq.s32.totalorder %s22, 1
      %p113 = por %p111, %p112
      %p115 = scmp.ne.s32.totalorder %s98, %s114
      %p116 = scmp.eq.s32.totalorder %s22, 0
      %p117 = por %p115, %p116
      %p118 = scmp.le.s32.totalorder 1, %s16
      %p119 = scmp.lt.s32.totalorder %s16, 3
      %p120 = pnand %p118, %p119
      %p121 = pneg %p120
      // Predicated region
      $region9: #{tpu_custom_call.1} parent=5 // pred_check
        _
      $region10: #{tpu_custom_call.1} parent=5 // pred_check_branch
        %123 = sbr.rel (%p120) target = $region12
      $region11: #{tpu_custom_call.1} parent=5 // pred_region
        %s124 = ssub.s32 %s16, 1
        // Predicated region
        $region13: #{tpu_custom_call.1} parent=11 // pred_check
          %p125 = pneg %p63
        $region14: #{tpu_custom_call.1} parent=11 // pred_check_branch
          %127 = sbr.rel (%p125) target = $region16
        $region15: #{tpu_custom_call.1} parent=11 // pred_region
          %s129 = ssub.s32 128, 128
          %130 = vsyncadd [#allocation7], %s129
          %s131 = sshll.u32 [#allocation6], 4
          %s132 = int_to_ptr.vmem [resolvable:$true] %s131
          %137 = dma.hbm_to_vmem [thread:$0]  %s1, 128, %s132, [#allocation7], 64, 64, 4
        $region16: #{tpu_custom_call.1} parent=11 // pred_fallthru
          _
        // Predicated region
        $region17: #{tpu_custom_call.1} parent=11 // pred_check
          %p138 = pneg %p84
        $region18: #{tpu_custom_call.1} parent=11 // pred_check_branch
          %140 = sbr.rel (%p138) target = $region20
        $region19: #{tpu_custom_call.1} parent=11 // pred_region
          %s142 = ssub.s32 512, 512
          %143 = vsyncadd [#allocation7], %s142
          %s144 = sshll.u32 [#allocation8], 4
          %s145 = int_to_ptr.vmem [resolvable:$true] %s144
          %150 = dma.hbm_to_vmem [thread:$0]  %s2, 512, %s145, [#allocation7], 256, 256, 16
        $region20: #{tpu_custom_call.1} parent=11 // pred_fallthru
          _
      $region12: #{tpu_custom_call.1} parent=5 // pred_fallthru
        _
      %p151 = scmp.lt.s32.totalorder %s16, 2
      // Predicated region
      $region21: #{tpu_custom_call.1} parent=5 // pred_check
        %p152 = pneg %p151
      $region22: #{tpu_custom_call.1} parent=5 // pred_check_branch
        %154 = sbr.rel (%p152) target = $region24
      $region23: #{tpu_custom_call.1} parent=5 // pred_region
        // Predicated region
        $region25: #{tpu_custom_call.1} parent=23 // pred_check
          %p155 = pneg %p36
        $region26: #{tpu_custom_call.1} parent=23 // pred_check_branch
          %157 = sbr.rel (%p155) target = $region28
        $region27: #{tpu_custom_call.1} parent=23 // pred_region
          %s158 = sand.u32 %s26, 1
          %s159 = scalar_lea.sflag [#allocation4], %s158
          %s160 = sand.u32 %s26, 1
          %s161 = smul.addr %s160, 16
          %s162 = scalar_lea.vmem [#allocation3], %s161
          %s164 = ssub.s32 256, 256
          %165 = vsyncadd %s159, %s164
          %s166 = smul.addr %s16, 2
          %s167 = smul.addr %s166, 128
          %s168 = scalar_lea.hbm %s0, %s167
          %s170 = sshll.u32 %s162, 4
          %s171 = int_to_ptr.vmem [resolvable:$true] %s170
          %173 = dma.hbm_to_vmem [thread:$0]  %s168, 256, %s171, %s159
        $region28: #{tpu_custom_call.1} parent=23 // pred_fallthru
          _
      $region24: #{tpu_custom_call.1} parent=5 // pred_fallthru
        _
      %p174 = scmp.le.s32.totalorder 1, %s16
      %p175 = scmp.lt.s32.totalorder %s16, 3
      %p176 = pnand %p174, %p175
      %p177 = pneg %p176
      // Predicated region
      $region29: #{tpu_custom_call.1} parent=5 // pred_check
        _
      $region30: #{tpu_custom_call.1} parent=5 // pred_check_branch
        %179 = sbr.rel (%p176) target = $region32
      $region31: #{tpu_custom_call.1} parent=5 // pred_region
        %s180 = ssub.s32 %s16, 1
        %s181 = sand.u32 %s29, 1
        %s182 = scalar_lea.sflag [#allocation4], %s181
        %s183 = sand.u32 %s29, 1
        %s184 = smul.addr %s183, 16
        %s185 = scalar_lea.vmem [#allocation3], %s184
        // Predicated region
        $region33: #{tpu_custom_call.1} parent=31 // pred_check
          %p186 = pneg %p42
        $region34: #{tpu_custom_call.1} parent=31 // pred_check_branch
          %188 = sbr.rel (%p186) target = $region36
        $region35: #{tpu_custom_call.1} parent=31 // pred_region
          %189 = dma.done %s182, 256
        $region36: #{tpu_custom_call.1} parent=31 // pred_fallthru
          _
        // Predicated region
        $region37: #{tpu_custom_call.1} parent=31 // pred_check
          %p190 = pneg %p63
        $region38: #{tpu_custom_call.1} parent=31 // pred_check_branch
          %192 = sbr.rel (%p190) target = $region40
        $region39: #{tpu_custom_call.1} parent=31 // pred_region
          %193 = dma.done [#allocation7], 128
        $region40: #{tpu_custom_call.1} parent=31 // pred_fallthru
          _
        // Predicated region
        $region41: #{tpu_custom_call.1} parent=31 // pred_check
          %p194 = pneg %p84
        $region42: #{tpu_custom_call.1} parent=31 // pred_check_branch
          %196 = sbr.rel (%p194) target = $region44
        $region43: #{tpu_custom_call.1} parent=31 // pred_region
          %197 = dma.done [#allocation7], 512
        $region44: #{tpu_custom_call.1} parent=31 // pred_fallthru
          _
        %s198 = sand.u32 %s29, 1
        %s199 = scalar_lea.sflag [#allocation4], %s198
        %s200 = sand.u32 %s29, 1
        %s201 = smul.addr %s200, 16
        %s202 = scalar_lea.vmem [#allocation3], %s201
        %p203 = pneg %p42
        %p204 = pneg %p39
        %p205 = pneg %p63
        %p206 = pneg %p60
        %p207 = pneg %p84
        %p208 = pneg %p81
        %p209 = pneg %p110
        %p210 = pneg %p107
        %s211 = sand.u32 %s97, 1
        %s212 = scalar_lea.sflag [#allocation5], %s211
        %s213 = sand.u32 %s97, 1
        %s214 = smul.addr %s213, 32
        %s215 = scalar_lea.vmem [#allocation9], %s214
        %v217 = vld [vmem:[#allocation6] sm:$0xf]
        %v218 = vld [vmem:[#allocation6 + $0x4] sm:$0xf]
        %v219 = vld [vmem:[#allocation8] sm:$0xff]
        %v220 = vld [vmem:[#allocation8 + $0x8] sm:$0xff]
        %v221 = vld [vmem:[#allocation8 + $0x10] sm:$0x1]
        %v222 = vld [vmem:[#allocation8 + $0x18] sm:$0x1]
        %vm223 = vcmp.ne.f32.partialorder %v219, 0.0
        %vm224 = vcmp.ne.f32.partialorder %v220, 0.0
        %vm225 = vcmp.ne.f32.partialorder %v221, 0.0
        %vm226 = vcmp.ne.f32.partialorder %v222, 0.0
        %v227 = vld [vmem:[%s185] sm:$0xff]
        %v228 = vld [vmem:[%s185 + $0x8] sm:$0xff]
        %229 = vrot.lane.b32.xlu0 %v227, 17
        %v230 = vpop.permute.xlu0 %229
        %231 = vrot.lane.b32.xlu0 %v228, 17
        %v232 = vpop.permute.xlu0 %231
        %v233 = vlaneseq
        %v234 = vand.u32 %v233, 127
        %vm235 = vcmp.lt.s32.totalorder %v234, 17
        %v236 = vsel %vm235, %v230, %v232
        %v237 = vsel %vm235, %v232, %v230
        %v238 = vsel %vm223, 1, 0
        %v239 = vsel %vm224, 1, 0
        %v240 = vlaneseq
        %v241 = vshrl.u32 %v240, 7
        %v242 = vsub.s32 0, %v241
        %v243 = vrot.slane %v238, %v242
        %v244 = vlaneseq
        %v245 = vshrl.u32 %v244, 7
        %v246 = vsub.s32 0, %v245
        %v247 = vrot.slane %v239, %v246
        %vm248 = vcmp.eq.s32.totalorder %v243, 1
        %vm249 = vcmp.eq.s32.totalorder %v247, 1
        %v250 = vsel %vm248, %v237, 0.0
        %v251 = vsel %vm249, %v236, 0.0
        %v252 = vpack.c.bf16 %v250, %v250
        %v253 = vpack.c.bf16 %v251, %v251
        %v256 = vunpack.c.l.b16 %v252
        %v257 = vunpack.c.l.b16 %v253
        %v258 = vpack.c.b16 %v257, %v256
        %260 = vst [vmem:[#allocation2] sm:$0xff] %v258
        %261 = vrot.lane.b32.xlu0 %v227, 16
        %v262 = vpop.permute.xlu0 %261
        %263 = vrot.lane.b32.xlu0 %v228, 16
        %v264 = vpop.permute.xlu0 %263
        %vm265 = vcmp.lt.s32.totalorder %v234, 16
        %v266 = vsel %vm265, %v262, %v264
        %v267 = vsel %vm265, %v264, %v262
        %v268 = vlaneseq
        %v269 = vshrl.u32 %v268, 7
        %v270 = vsub.s32 1, %v269
        %v271 = vrot.slane %v238, %v270
        %v272 = vlaneseq
        %v273 = vshrl.u32 %v272, 7
        %v274 = vsub.s32 1, %v273
        %v275 = vrot.slane %v239, %v274
        %vm276 = vcmp.eq.s32.totalorder %v271, 1
        %vm277 = vcmp.eq.s32.totalorder %v275, 1
        %v278 = vsel %vm276, %v267, 0.0
        %v279 = vsel %vm277, %v266, 0.0
        %v280 = vpack.c.bf16 %v278, %v278
        %v281 = vpack.c.bf16 %v279, %v279
        %v284 = vunpack.c.l.b16 %v280
        %v285 = vunpack.c.l.b16 %v281
        %v286 = vpack.c.b16 %v285, %v284
        %288 = vst [vmem:[#allocation2 + $0x8] sm:$0xff] %v286
        %289 = vrot.lane.b32.xlu0 %v227, 15
        %v290 = vpop.permute.xlu0 %289
        %291 = vrot.lane.b32.xlu0 %v228, 15
        %v292 = vpop.permute.xlu0 %291
        %vm293 = vcmp.lt.s32.totalorder %v234, 15
        %v294 = vsel %vm293, %v290, %v292
        %v295 = vsel %vm293, %v292, %v290
        %v296 = vlaneseq
        %v297 = vshrl.u32 %v296, 7
        %v298 = vsub.s32 2, %v297
        %v299 = vrot.slane %v238, %v298
        %v300 = vlaneseq
        %v301 = vshrl.u32 %v300, 7
        %v302 = vsub.s32 2, %v301
        %v303 = vrot.slane %v239, %v302
        %vm304 = vcmp.eq.s32.totalorder %v299, 1
        %vm305 = vcmp.eq.s32.totalorder %v303, 1
        %v306 = vsel %vm304, %v295, 0.0
        %v307 = vsel %vm305, %v294, 0.0
        %v308 = vpack.c.bf16 %v306, %v306
        %v309 = vpack.c.bf16 %v307, %v307
        %v312 = vunpack.c.l.b16 %v308
        %v313 = vunpack.c.l.b16 %v309
        %v314 = vpack.c.b16 %v313, %v312
        %316 = vst [vmem:[#allocation2 + $0x10] sm:$0xff] %v314
        %317 = vrot.lane.b32.xlu0 %v227, 1
        %v318 = vpop.permute.xlu0 %317
        %319 = vrot.lane.b32.xlu0 %v228, 1
        %v320 = vpop.permute.xlu0 %319
        %vm321 = vcmp.lt.s32.totalorder %v234, 1
        %v322 = vsel %vm321, %v318, %v320
        %v323 = vsel %vm321, %v320, %v318
        %v324 = vlaneseq
        %v325 = vshrl.u32 %v324, 7
        %v326 = vsub.s32 3, %v325
        %v327 = vrot.slane %v238, %v326
        %v328 = vlaneseq
        %v329 = vshrl.u32 %v328, 7
        %v330 = vsub.s32 3, %v329
        %v331 = vrot.slane %v239, %v330
        %vm332 = vcmp.eq.s32.totalorder %v327, 1
        %vm333 = vcmp.eq.s32.totalorder %v331, 1
        %v334 = vsel %vm332, %v323, 0.0
        %v335 = vsel %vm333, %v322, 0.0
        %v336 = vpack.c.bf16 %v334, %v334
        %v337 = vpack.c.bf16 %v335, %v335
        %v340 = vunpack.c.l.b16 %v336
        %v341 = vunpack.c.l.b16 %v337
        %v342 = vpack.c.b16 %v341, %v340
        %344 = vst [vmem:[#allocation2 + $0x18] sm:$0xff] %v342
        %v345 = vpack.c.bf16 %v227, %v227
        %v346 = vpack.c.bf16 %v228, %v228
        %v349 = vunpack.c.l.b16 %v345
        %v350 = vunpack.c.l.b16 %v346
        %v351 = vpack.c.b16 %v350, %v349
        %353 = vst [vmem:[#allocation2 + $0x20] sm:$0xff] %v351
        %354 = vrot.lane.b32.xlu0 %v227, 127
        %v355 = vpop.permute.xlu0 %354
        %356 = vrot.lane.b32.xlu0 %v228, 127
        %v357 = vpop.permute.xlu0 %356
        %vm358 = vcmp.lt.s32.totalorder %v234, 127
        %v359 = vsel %vm358, %v355, %v357
        %v360 = vsel %vm358, %v357, %v355
        %v361 = vlaneseq
        %v362 = vshrl.u32 %v361, 7
        %v363 = vsub.s32 5, %v362
        %v364 = vrot.slane %v238, %v363
        %v365 = vlaneseq
        %v366 = vshrl.u32 %v365, 7
        %v367 = vsub.s32 5, %v366
        %v368 = vrot.slane %v239, %v367
        %vm369 = vcmp.eq.s32.totalorder %v364, 1
        %vm370 = vcmp.eq.s32.totalorder %v368, 1
        %v371 = vsel %vm369, %v359, 0.0
        %v372 = vsel %vm370, %v360, 0.0
        %v373 = vpack.c.bf16 %v371, %v371
        %v374 = vpack.c.bf16 %v372, %v372
        %v377 = vunpack.c.l.b16 %v373
        %v378 = vunpack.c.l.b16 %v374
        %v379 = vpack.c.b16 %v378, %v377
        %381 = vst [vmem:[#allocation2 + $0x28] sm:$0xff] %v379
        %382 = vrot.lane.b32.xlu0 %v227, 113
        %v383 = vpop.permute.xlu0 %382
        %384 = vrot.lane.b32.xlu0 %v228, 113
        %v385 = vpop.permute.xlu0 %384
        %vm386 = vcmp.lt.s32.totalorder %v234, 113
        %v387 = vsel %vm386, %v383, %v385
        %v388 = vsel %vm386, %v385, %v383
        %v389 = vlaneseq
        %v390 = vshrl.u32 %v389, 7
        %v391 = vsub.s32 6, %v390
        %v392 = vrot.slane %v238, %v391
        %v393 = vlaneseq
        %v394 = vshrl.u32 %v393, 7
        %v395 = vsub.s32 6, %v394
        %v396 = vrot.slane %v239, %v395
        %vm397 = vcmp.eq.s32.totalorder %v392, 1
        %vm398 = vcmp.eq.s32.totalorder %v396, 1
        %v399 = vsel %vm397, %v387, 0.0
        %v400 = vsel %vm398, %v388, 0.0
        %v401 = vpack.c.bf16 %v399, %v399
        %v402 = vpack.c.bf16 %v400, %v400
        %v405 = vunpack.c.l.b16 %v401
        %v406 = vunpack.c.l.b16 %v402
        %v407 = vpack.c.b16 %v406, %v405
        %409 = vst [vmem:[#allocation2 + $0x30] sm:$0xff] %v407
        %410 = vrot.lane.b32.xlu0 %v227, 112
        %v411 = vpop.permute.xlu0 %410
        %412 = vrot.lane.b32.xlu0 %v228, 112
        %v413 = vpop.permute.xlu0 %412
        %vm414 = vcmp.lt.s32.totalorder %v234, 112
        %v415 = vsel %vm414, %v411, %v413
        %v416 = vsel %vm414, %v413, %v411
        %v417 = vlaneseq
        %v418 = vshrl.u32 %v417, 7
        %v419 = vsub.s32 7, %v418
        %v420 = vrot.slane %v238, %v419
        %v421 = vlaneseq
        %v422 = vshrl.u32 %v421, 7
        %v423 = vsub.s32 7, %v422
        %v424 = vrot.slane %v239, %v423
        %vm425 = vcmp.eq.s32.totalorder %v420, 1
        %vm426 = vcmp.eq.s32.totalorder %v424, 1
        %v427 = vsel %vm425, %v415, 0.0
        %v428 = vsel %vm426, %v416, 0.0
        %v429 = vpack.c.bf16 %v427, %v427
        %v430 = vpack.c.bf16 %v428, %v428
        %v433 = vunpack.c.l.b16 %v429
        %v434 = vunpack.c.l.b16 %v430
        %v435 = vpack.c.b16 %v434, %v433
        %437 = vst [vmem:[#allocation2 + $0x38] sm:$0xff] %v435
        %438 = vrot.lane.b32.xlu0 %v227, 111
        %v439 = vpop.permute.xlu0 %438
        %440 = vrot.lane.b32.xlu0 %v228, 111
        %v441 = vpop.permute.xlu0 %440
        %vm442 = vcmp.lt.s32.totalorder %v234, 111
        %v443 = vsel %vm442, %v439, %v441
        %v444 = vsel %vm442, %v441, %v439
        %v445 = vsel %vm225, 1, 0
        %v446 = vsel %vm226, 1, 0
        %v447 = vlaneseq
        %v448 = vshrl.u32 %v447, 7
        %v449 = vsub.s32 0, %v448
        %v450 = vrot.slane %v445, %v449
        %v451 = vlaneseq
        %v452 = vshrl.u32 %v451, 7
        %v453 = vsub.s32 0, %v452
        %v454 = vrot.slane %v446, %v453
        %vm455 = vcmp.eq.s32.totalorder %v450, 1
        %vm456 = vcmp.eq.s32.totalorder %v454, 1
        %v457 = vsel %vm455, %v443, 0.0
        %v458 = vsel %vm456, %v444, 0.0
        %v459 = vpack.c.bf16 %v457, %v457
        %v460 = vpack.c.bf16 %v458, %v458
        %v463 = vunpack.c.l.b16 %v459
        %v464 = vunpack.c.l.b16 %v460
        %v465 = vpack.c.b16 %v464, %v463
        %467 = vst [vmem:[#allocation2 + $0x40] sm:$0xff] %v465
        %v468 = vld [vmem:[#allocation2] sm:$0xff]
        %v469 = vld [vmem:[#allocation2 + $0x8] sm:$0xff]
        %v470 = vld [vmem:[#allocation2 + $0x10] sm:$0xff]
        %v471 = vld [vmem:[#allocation2 + $0x18] sm:$0xff]
        %v472 = vld [vmem:[#allocation2 + $0x20] sm:$0xff]
        %v473 = vld [vmem:[#allocation2 + $0x28] sm:$0xff]
        %v474 = vld [vmem:[#allocation2 + $0x30] sm:$0xff]
        %v475 = vld [vmem:[#allocation2 + $0x38] sm:$0xff]
        %v476 = vld [vmem:[#allocation2 + $0x40] sm:$0xff]
        %v479 = vunpack.c.l.b16 %v217
        %v480 = vunpack.c.l.b16 %v218
        %v481 = vpack.c.b16 %v480, %v479
        %v491 = vunpack.c.l.b16 %v468
        %v492 = vunpack.c.h.b16 %v468
        %v493 = vunpack.c.l.b16 %v469
        %v494 = vunpack.c.h.b16 %v469
        %v495 = vunpack.c.l.b16 %v470
        %v496 = vunpack.c.h.b16 %v470
        %v497 = vunpack.c.l.b16 %v471
        %v498 = vunpack.c.h.b16 %v471
        %v499 = vunpack.c.l.b16 %v472
        %v500 = vunpack.c.h.b16 %v472
        %v501 = vunpack.c.l.b16 %v473
        %v502 = vunpack.c.h.b16 %v473
        %v503 = vunpack.c.l.b16 %v474
        %v504 = vunpack.c.h.b16 %v474
        %v505 = vunpack.c.l.b16 %v475
        %v506 = vunpack.c.h.b16 %v475
        %v507 = vunpack.c.l.b16 %v476
        %v508 = vunpack.c.h.b16 %v476
        %v509 = vpack.c.b16 %v493, %v491
        %v510 = vpack.c.b16 %v494, %v492
        %v511 = vpack.c.b16 %v497, %v495
        %v512 = vpack.c.b16 %v498, %v496
        %v513 = vpack.c.b16 %v501, %v499
        %v514 = vpack.c.b16 %v502, %v500
        %v515 = vpack.c.b16 %v505, %v503
        %v516 = vpack.c.b16 %v506, %v504
        %v517 = vpack.c.b16 %v507, %v507
        %v518 = vpack.c.b16 %v508, %v508
        %vm527 = vcmask 588800
        %v529 = vsel %vm527, %v481, 0
        %vm531 = vcmask 1043456
        %v533 = vsel %vm531, %v517, 0
        %v536 = vsel %vm531, %v518, 0
        %538 = vmatprep.subr.bf16.mxu0 %v510
        %539 = vmatpush1.bf16.msra.mxu0 %v509
        %540 = vmatprep.subr.bf16.mxu0 %v512
        %541 = vmatpush1.bf16.msra.mxu0 %v511
        %542 = vmatprep.subr.bf16.mxu0 %v514
        %543 = vmatpush1.bf16.msra.mxu0 %v513
        %544 = vmatprep.subr.bf16.mxu0 %v516
        %545 = vmatpush1.bf16.msra.mxu0 %v515
        %546 = vmatprep.subr.bf16.mxu0 %v536
        %547 = vmatpush1.bf16.msra.mxu0 %v533
        %548 = vmatprep.subr.bf16.mxu0 0
        %549 = vmatpush1.bf16.msra.mxu0 0
        %550 = vmatprep.subr.bf16.mxu0 0
        %551 = vmatpush1.bf16.msra.mxu0 0
        %552 = vmatprep.subr.bf16.mxu0 0
        %553 = vmatpush1.bf16.msra.mxu0 0
        %554 = vmatprep.subr.bf16.mxu0 0
        %555 = vmatpush1.bf16.msra.mxu0 0
        %556 = vmatprep.subr.bf16.mxu0 0
        %557 = vmatpush1.bf16.msra.mxu0 0
        %558 = vmatprep.subr.bf16.mxu0 0
        %559 = vmatpush1.bf16.msra.mxu0 0
        %560 = vmatprep.subr.bf16.mxu0 0
        %561 = vmatpush1.bf16.msra.mxu0 0
        %562 = vmatprep.subr.bf16.mxu0 0
        %563 = vmatpush1.bf16.msra.mxu0 0
        %564 = vmatprep.subr.bf16.mxu0 0
        %565 = vmatpush1.bf16.msra.mxu0 0
        %566 = vmatprep.subr.bf16.mxu0 0
        %567 = vmatpush1.bf16.msra.mxu0 0
        %568 = vmatprep.subr.bf16.mxu0 0
        %569 = vmatpush1.bf16.msra.mxu0 0
        %570 = vmatprep.mubr.bf16.mxu0 0
        %571 = vmatmul.mubr.bf16.gmra.mrb[0].mxu0 %v529
        %v572 = vpop.f32.mrb[0].mxu0
        %v573 = vadd.f32 0.0, %v572
        %v574 = vpop.f32.mrb[0].mxu0
        %v575 = vadd.f32 0.0, %v574
        %v576 = vpop.f32.mrb[0].mxu0
        %v577 = vadd.f32 0.0, %v576
        %v578 = vpop.f32.mrb[0].mxu0
        %v579 = vadd.f32 0.0, %v578
        %580 = vdwg.mxu0
        %581 = vst [vmem:[%s215] sm:$0xff] %v573
        %582 = vst [vmem:[%s215 + $0x8] sm:$0xff] %v575
        %583 = vst [vmem:[%s215 + $0x10] sm:$0xff] %v577
        %584 = vst [vmem:[%s215 + $0x18] sm:$0xff] %v579
        %s585 = sand.u32 %s97, 1
        %s586 = scalar_lea.sflag [#allocation5], %s585
        %s587 = sand.u32 %s97, 1
        %s588 = smul.addr %s587, 32
        %s589 = scalar_lea.vmem [#allocation9], %s588
        // Predicated region
        $region45: #{tpu_custom_call.1} parent=31 // pred_check
          %p590 = pneg %p107
        $region46: #{tpu_custom_call.1} parent=31 // pred_check_branch
          %592 = sbr.rel (%p590) target = $region48
        $region47: #{tpu_custom_call.1} parent=31 // pred_region
          %s594 = ssub.s32 512, 512
          %595 = vsyncadd %s586, %s594
          %s596 = smul.addr %s21, 4
          %s597 = smul.addr %s596, 128
          %s598 = scalar_lea.hbm %s3, %s597
          %s599 = sshll.u32 %s589, 4
          %s600 = int_to_ptr.vmem [resolvable:$true] %s599
          %605 = dma.vmem_to_hbm [thread:$0]  %s600, 512, %s598, %s586, 256, 256, 16
        $region48: #{tpu_custom_call.1} parent=31 // pred_fallthru
          _
      $region32: #{tpu_custom_call.1} parent=5 // pred_fallthru
        _
      %p606 = scmp.le.s32.totalorder 2, %s16
      // Predicated region
      $region49: #{tpu_custom_call.1} parent=5 // pred_check
        %p607 = pneg %p606
      $region50: #{tpu_custom_call.1} parent=5 // pred_check_branch
        %609 = sbr.rel (%p607) target = $region52
      $region51: #{tpu_custom_call.1} parent=5 // pred_region
        %s610 = ssub.s32 %s16, 2
        // Predicated region
        $region53: #{tpu_custom_call.1} parent=51 // pred_check
          %p611 = pneg %p113
        $region54: #{tpu_custom_call.1} parent=51 // pred_check_branch
          %613 = sbr.rel (%p611) target = $region56
        $region55: #{tpu_custom_call.1} parent=51 // pred_region
          %s614 = sand.u32 %s98, 1
          %s615 = scalar_lea.sflag [#allocation5], %s614
          %s616 = sand.u32 %s98, 1
          %s617 = smul.addr %s616, 32
          %s618 = scalar_lea.vmem [#allocation9], %s617
          %619 = dma.done %s615, 512
        $region56: #{tpu_custom_call.1} parent=51 // pred_fallthru
          _
      $region52: #{tpu_custom_call.1} parent=5 // pred_fallthru
        _
    $region6: #{tpu_custom_call.1} parent=1 // loop_footer
      %s20 = sadd.s32 1, %s16
    $region7: #{tpu_custom_call.1} parent=1 // loop_footer_branch
      %15 = sbr.rel target = $region3
    $region8: #{tpu_custom_call.1} parent=1 // loop_exit
      _
    %620 = vsyncpa [#allocation4], 1
    %s621 = scalar_lea.sflag [#allocation4], 1
    %622 = vsyncpa %s621, 1
    %623 = vsyncpa [#allocation7], 1
    %624 = vsyncpa [#allocation5], 1
    %s625 = scalar_lea.sflag [#allocation5], 1
    %626 = vsyncpa %s625, 1

</llo_original>
